<compile_context>
chip_gen: v7x
topology: tpu7x:2x2x1
jax: 0.10.0
libtpu: 0.0.40
codegen_flags: <defaults>
</compile_context>

<pallas_src>
import functools

import jax
import jax.numpy as jnp
from jax import lax
from jax.experimental import pallas as pl
from jax.experimental.pallas import tpu as pltpu

BN_EPS = 1e-5
LRELU_SLOPE = 0.2
LANE = 128
# MXU operand / conv-intermediate dtype: bf16 halves HBM+VMEM bytes and doubles MXU
# throughput.  Accumulation, batch statistics and BN math stay f32.
MXU_DTYPE = jnp.bfloat16
MAX_TILE_ROWS = 4096        # cap on matmul M rows per grid step
STAT_CHUNK = 512            # row chunk for the fused sum / sum-of-squares pass


def _round_up(x, m):
    return -(-x // m) * m


def _vmem_capacity_bytes():
    """Physical VMEM of the local chip generation (fallback: smallest, v7x 64 MiB)."""
    try:
        return int(pltpu.get_tpu_info().vmem_capacity_bytes)
    except Exception:
        return 64 * 1024 * 1024


def _pick_tile_rows(m, kc, c_pad, vmem_budget):
    """Largest 8-aligned row tile whose steady-state VMEM footprint fits the budget."""
    # bf16 LHS double-buffer + bf16 conv-out double-buffer + live f32 accumulator
    per_row = 2 * kc * 2 + 2 * c_pad * 2 + c_pad * 4
    # bf16 weight double-buffer + scratch slack.
    # TODO(synk): pipeline_mode=pl.Buffered(1) on the (constant index_map) weight spec
    # would drop one weight copy; kept default-buffered and budgeted for both copies.
    fixed = 2 * kc * c_pad * 2 + (2 << 20)
    avail = vmem_budget - fixed
    max_rows = (avail // per_row // 8) * 8 if avail >= 8 * per_row else 8
    tile = max(8, min(max_rows, MAX_TILE_ROWS, _round_up(m, 8)))
    nt = -(-m // tile)
    return tile, nt, nt * tile


def _conv_stats_kernel(x_ref, w_ref, conv_ref, sum_ref, sumsq_ref):
    """Phase 1: one MXU matmul per (batch, row-tile) + per-batch stat partials.

    x_ref:    (1, TR, K)      bf16  tap-folded input rows, K = kh'*kw'*C_in
    w_ref:    (K, C_pad)      bf16
    conv_ref: (1, TR, C_pad)  bf16  pre-BN conv tile (narrow store: phase 2 is mem-bound)
    sum_ref / sumsq_ref: (1, 1, C_pad) f32 per-batch accumulators, resident across the
        row-tile axis (batch axis stays megacore-parallel).
    """
    @pl.when(pl.program_id(1) == 0)
    def _init():
        sum_ref[...] = jnp.zeros_like(sum_ref)
        sumsq_ref[...] = jnp.zeros_like(sumsq_ref)

    acc = jnp.dot(x_ref[0], w_ref[...], preferred_element_type=jnp.float32)
    conv_ref[0] = acc.astype(conv_ref.dtype)

    # Fused single pass over row chunks: both stats per chunk, so the full-tile f32
    # acc*acc temporary is never materialized.  Zero-padded tail rows contribute 0.
    rows, cp = acc.shape
    s = jnp.zeros((1, cp), jnp.float32)
    ss = jnp.zeros((1, cp), jnp.float32)
    for r0 in range(0, rows, STAT_CHUNK):
        blk = acc[r0:r0 + STAT_CHUNK]
        s = s + jnp.sum(blk, axis=0, keepdims=True)
        ss = ss + jnp.sum(blk * blk, axis=0, keepdims=True)
    sum_ref[0] += s
    sumsq_ref[0] += ss


def _bn_lrelu_kernel(conv_ref, scale_ref, shift_ref, out_ref):
    """Phase 2: y = conv*scale + shift, LeakyReLU(0.2); bf16 in, bf16 out, in place."""
    y = conv_ref[0].astype(jnp.float32) * scale_ref[...] + shift_ref[...]
    out_ref[0] = jnp.where(y >= 0.0, y, LRELU_SLOPE * y).astype(out_ref.dtype)


@functools.partial(jax.jit, static_argnames=("kernel_size", "stride", "padding"))
def conv2d_block(x, weight, gamma, beta, *, kernel_size=4, stride=2, padding=1):
    """Forward of Conv2dBlock.  x: (N, C_in, H, W); weight: (C_out, C_in, KH, KW)."""
    n, c_in, h, w = x.shape
    c_out, _, kh, kw = weight.shape
    s = stride
    oh = (h + 2 * padding - kh) // s + 1
    ow = (w + 2 * padding - kw) // s + 1
    qh = -(-kh // s)                      # ceil(KH/s): H window shifts folded into K
    qw = -(-kw // s)                      # ceil(KW/s): W window shifts folded into K
    hq, wq = oh + qh - 1, ow + qw - 1
    c_pad = _round_up(c_out, LANE)        # lane-dense output channels
    kc = qh * qw * s * s * c_in           # full tap-folded contraction size
    m = oh * ow                           # output pixels per batch element
    m_total = n * m

    cap = _vmem_capacity_bytes()
    tile, nt, m_pad = _pick_tile_rows(m, kc, c_pad, int(cap * 0.55))
    vmem_limit = min(int(cap * 0.8), 128 * 1024 * 1024)

    # ---- tap-folded (strided-conv im2col) input; bf16 from the first relayout op ------
    x_nhwc = jnp.transpose(x, (0, 2, 3, 1)).astype(MXU_DTYPE)
    hp, wp = s * hq, s * wq
    xp = jnp.pad(x_nhwc, ((0, 0), (padding, hp - h - padding),
                          (padding, wp - w - padding), (0, 0)))
    # polyphase view: p6[n, j', r, i', c, ch] = xp[n, s*j'+r, s*i'+c, ch]
    p6 = xp.reshape(n, hq, s, wq, s, c_in)
    # all qh*qw (H, W) window shifts into the contraction axis -> one matmul per tile,
    # no halo'd/overlapping blocks and no in-kernel shifted (misaligned) slices.
    wins = jnp.stack([p6[:, q:q + oh, :, p:p + ow, :, :]
                      for q in range(qh) for p in range(qw)], axis=0)
    lhs = wins.transpose(1, 2, 4, 0, 3, 5, 6).reshape(n, m, kc)
    lhs = jnp.pad(lhs, ((0, 0), (0, m_pad - m), (0, 0)))   # zero rows: inert in stats

    # ---- weights in matching (q, p, r, c, ci) contraction order, lane-dense channels --
    wpad = jnp.pad(weight.astype(jnp.float32),
                   ((0, 0), (0, 0), (0, qh * s - kh), (0, qw * s - kw)))
    w2 = (wpad.reshape(c_out, c_in, qh, s, qw, s)
          .transpose(2, 4, 3, 5, 1, 0).reshape(kc, c_out))
    w2 = jnp.pad(w2, ((0, 0), (0, c_pad - c_out))).astype(MXU_DTYPE)

    # ---- phase 1: conv + per-batch batch-stat partials ---------------------------------
    conv_flat, ch_sum, ch_sumsq = pl.pallas_call(
        _conv_stats_kernel,
        grid=(n, nt),
        in_specs=[
            pl.BlockSpec((1, tile, kc), lambda b, t: (b, t, 0)),
            pl.BlockSpec((kc, c_pad), lambda b, t: (0, 0)),
        ],
        out_specs=(
            pl.BlockSpec((1, tile, c_pad), lambda b, t: (b, t, 0)),
            pl.BlockSpec((1, 1, c_pad), lambda b, t: (b, 0, 0)),
            pl.BlockSpec((1, 1, c_pad), lambda b, t: (b, 0, 0)),
        ),
        out_shape=(
            jax.ShapeDtypeStruct((n, m_pad, c_pad), MXU_DTYPE),
            jax.ShapeDtypeStruct((n, 1, c_pad), jnp.float32),
            jax.ShapeDtypeStruct((n, 1, c_pad), jnp.float32),
        ),
        # stat blocks are only revisited along the row-tile axis -> it is "arbitrary";
        # every block index is unique along the batch axis -> megacore-parallel (v7x).
        compiler_params=pltpu.CompilerParams(
            dimension_semantics=("parallel", "arbitrary"),
            vmem_limit_bytes=vmem_limit),
        cost_estimate=pl.CostEstimate(
            flops=2 * n * m_pad * kc * c_pad,
            transcendentals=0,
            bytes_accessed=(n * m_pad * kc + kc * c_pad + n * m_pad * c_pad) * 2
            + 2 * n * c_pad * 4),
    )(lhs, w2)

    # ---- fold the tiny per-batch partials + BN affine into per-channel scale/shift ----
    cnt = float(m_total)                  # true pixel count; padded rows contributed 0
    mean = jnp.sum(ch_sum, axis=0) / cnt                              # (1, c_pad)
    var = jnp.maximum(jnp.sum(ch_sumsq, axis=0) / cnt - mean * mean, 0.0)
    inv_std = lax.rsqrt(var + BN_EPS)
    gamma_p = jnp.pad(gamma.astype(jnp.float32).reshape(1, c_out),
                      ((0, 0), (0, c_pad - c_out)))
    beta_p = jnp.pad(beta.astype(jnp.float32).reshape(1, c_out),
                     ((0, 0), (0, c_pad - c_out)))
    scale = gamma_p * inv_std
    shift = beta_p - mean * scale

    # ---- phase 2: BatchNorm + LeakyReLU, in place over the bf16 conv buffer -----------
    out_flat = pl.pallas_call(
        _bn_lrelu_kernel,
        grid=(n, nt),
        in_specs=[
            pl.BlockSpec((1, tile, c_pad), lambda b, t: (b, t, 0)),
            pl.BlockSpec((1, c_pad), lambda b, t: (0, 0)),
            pl.BlockSpec((1, c_pad), lambda b, t: (0, 0)),
        ],
        out_specs=pl.BlockSpec((1, tile, c_pad), lambda b, t: (b, t, 0)),
        out_shape=jax.ShapeDtypeStruct((n, m_pad, c_pad), MXU_DTYPE),
        input_output_aliases={0: 0},      # normalize in place over the bf16 conv buffer
        compiler_params=pltpu.CompilerParams(
            dimension_semantics=("parallel", "parallel"),
            vmem_limit_bytes=vmem_limit),
        cost_estimate=pl.CostEstimate(
            flops=4 * n * m_pad * c_pad,
            transcendentals=0,
            bytes_accessed=2 * n * m_pad * c_pad * 2),
    )(conv_flat, scale, shift)

    # ---- back to NCHW (slice row/channel padding first) --------------------------------
    # TODO(synk): downstream blocks could consume the lane-dense (N, OH*OW, C) bf16
    # layout directly and skip this final slice + transpose round trip (OW < 128 here,
    # so phase 2 cannot write NCHW lane-dense directly).
    out = out_flat[:, :m, :c_out].reshape(n, oh, ow, c_out)
    return jnp.transpose(out, (0, 3, 1, 2)).astype(x.dtype)


def _reference(x, weight, gamma, beta, *, stride=2, padding=1):
    """Pure-JAX reference matching PyTorch semantics (conv -> BN train mode -> LeakyReLU)."""
    conv = lax.conv_general_dilated(
        x.astype(jnp.float32),
        weight.astype(jnp.float32),
        window_strides=(stride, stride),
        padding=[(padding, padding), (padding, padding)],
        dimension_numbers=("NCHW", "OIHW", "NCHW"),
        precision=lax.Precision.HIGHEST,
    )
    mean = jnp.mean(conv, axis=(0, 2, 3), keepdims=True)
    var = jnp.mean((conv - mean) ** 2, axis=(0, 2, 3), keepdims=True)
    xhat = (conv - mean) * lax.rsqrt(var + BN_EPS)
    out = gamma.reshape(1, -1, 1, 1) * xhat + beta.reshape(1, -1, 1, 1)
    return jnp.where(out >= 0.0, out, LRELU_SLOPE * out)


if __name__ == "__main__":
    # Small shapes consistent with the module: N=2, C_in=4, H=W=16 -> C_out=8, OH=OW=8.
    N, C_IN, H, W = 2, 4, 16, 16
    C_OUT, K, STRIDE, PAD = 8, 4, 2, 1

    key = jax.random.PRNGKey(0)
    kx, kw_ = jax.random.split(key)
    x = jax.random.normal(kx, (N, C_IN, H, W), dtype=jnp.float32)
    weight = 0.1 * jax.random.normal(kw_, (C_OUT, C_IN, K, K), dtype=jnp.float32)
    gamma = jnp.ones((C_OUT,), dtype=jnp.float32)   # BatchNorm2d affine defaults
    beta = jnp.zeros((C_OUT,), dtype=jnp.float32)

    out = conv2d_block(x, weight, gamma, beta, kernel_size=K, stride=STRIDE, padding=PAD)
    out = jax.block_until_ready(out)
    assert out.shape == (N, C_OUT, H // STRIDE, W // STRIDE), out.shape

    # Check vs. a reference fed the same bf16-rounded operands (isolates kernel logic
    # from the deliberate bf16 MXU / bf16 intermediate casts).
    x_r = x.astype(MXU_DTYPE).astype(jnp.float32)
    w_r = weight.astype(MXU_DTYPE).astype(jnp.float32)
    ref_same = _reference(x_r, w_r, gamma, beta, stride=STRIDE, padding=PAD)
    assert jnp.allclose(out, ref_same, atol=4e-2, rtol=4e-2), float(
        jnp.max(jnp.abs(out - ref_same)))

    # Looser sanity check vs. the full-f32 PyTorch-style reference.
    ref_f32 = _reference(x, weight, gamma, beta, stride=STRIDE, padding=PAD)
    assert jnp.allclose(out, ref_f32, atol=8e-2, rtol=8e-2), float(
        jnp.max(jnp.abs(out - ref_f32)))

    print("KERNEL_OK")
</pallas_src>

<mosaic_0001>
module attributes {stable_mosaic.version = 11 : i64} {
  func.func @_conv_stats_kernel(%arg0: i32, %arg1: i32, %arg2: memref<1x64x64xbf16, #tpu.memory_space<vmem>>, %arg3: memref<64x128xbf16, #tpu.memory_space<vmem>>, %arg4: memref<1x64x128xbf16, #tpu.memory_space<vmem>>, %arg5: memref<1x1x128xf32, #tpu.memory_space<vmem>>, %arg6: memref<1x1x128xf32, #tpu.memory_space<vmem>>) attributes {dimension_semantics = [#tpu.dimension_semantics<parallel>, #tpu.dimension_semantics<arbitrary>], iteration_bounds = array<i64: 2, 1>, scalar_prefetch = 0 : i64, scratch_operands = 0 : i64, tpu.core_type = #tpu.core_type<tc>, window_params = [{transform_indices = @transform_0, window_bounds = array<i64: 1, 64, 64>}, {pipeline_mode = #tpu.pipeline_mode<synchronous>, transform_indices = @transform_1, window_bounds = array<i64: 64, 128>}, {transform_indices = @transform_2, window_bounds = array<i64: 1, 64, 128>}, {transform_indices = @transform_3, window_bounds = array<i64: 1, 1, 128>}, {transform_indices = @transform_4, window_bounds = array<i64: 1, 1, 128>}]} {
    %c0_i32 = arith.constant 0 : i32
    %0 = arith.cmpi eq, %arg1, %c0_i32 : i32
    %1 = arith.extui %0 : i1 to i32
    %c0_i32_0 = arith.constant 0 : i32
    %2 = arith.cmpi ne, %1, %c0_i32_0 : i32
    scf.if %2 {
      %cst_24 = arith.constant 0.000000e+00 : f32
      %32 = vector.broadcast %cst_24 : f32 to vector<1x1x128xf32>
      %c0_25 = arith.constant 0 : index
      %c0_26 = arith.constant 0 : index
      %c0_27 = arith.constant 0 : index
      %33 = vector.load %arg5[%c0_25, %c0_26, %c0_27] : memref<1x1x128xf32, #tpu.memory_space<vmem>>, vector<1x1x128xf32>
      tpu.vector_store %arg5[%c0_25, %c0_26, %c0_27], %32 {strides = array<i32>} : memref<1x1x128xf32, #tpu.memory_space<vmem>>, vector<1x1x128xf32>,
      %cst_28 = arith.constant 0.000000e+00 : f32
      %34 = vector.broadcast %cst_28 : f32 to vector<1x1x128xf32>
      %c0_29 = arith.constant 0 : index
      %c0_30 = arith.constant 0 : index
      %c0_31 = arith.constant 0 : index
      %35 = vector.load %arg6[%c0_29, %c0_30, %c0_31] : memref<1x1x128xf32, #tpu.memory_space<vmem>>, vector<1x1x128xf32>
      tpu.vector_store %arg6[%c0_29, %c0_30, %c0_31], %34 {strides = array<i32>} : memref<1x1x128xf32, #tpu.memory_space<vmem>>, vector<1x1x128xf32>,
    } else {
    }
    %c0 = arith.constant 0 : index
    %c0_1 = arith.constant 0 : index
    %c0_2 = arith.constant 0 : index
    %3 = vector.load %arg2[%c0, %c0_1, %c0_2] : memref<1x64x64xbf16, #tpu.memory_space<vmem>>, vector<1x64x64xbf16>
    %4 = vector.shape_cast %3 : vector<1x64x64xbf16> to vector<64x64xbf16>
    %c0_3 = arith.constant 0 : index
    %c0_4 = arith.constant 0 : index
    %5 = vector.load %arg3[%c0_3, %c0_4] : memref<64x128xbf16, #tpu.memory_space<vmem>>, vector<64x128xbf16>
    %cst = arith.constant dense<0.000000e+00> : vector<64x128xf32>
    %6 = tpu.matmul %4, %5, %cst {dimension_numbers = #tpu.dot_dimension_numbers<[1], [0], [0], [1], [0, 0, 1, 1], [], []>} : vector<64x64xbf16>, vector<64x128xbf16>, vector<64x128xf32> -> vector<64x128xf32>
    %7 = arith.truncf %6 : vector<64x128xf32> to vector<64x128xbf16>
    %c0_5 = arith.constant 0 : index
    %c0_6 = arith.constant 0 : index
    %c0_7 = arith.constant 0 : index
    %8 = vector.load %arg4[%c0_5, %c0_6, %c0_7] : memref<1x64x128xbf16, #tpu.memory_space<vmem>>, vector<1x64x128xbf16>
    %9 = vector.shape_cast %8 : vector<1x64x128xbf16> to vector<64x128xbf16>
    %10 = vector.shape_cast %7 : vector<64x128xbf16> to vector<1x64x128xbf16>
    tpu.vector_store %arg4[%c0_5, %c0_6, %c0_7], %10 {strides = array<i32>} : memref<1x64x128xbf16, #tpu.memory_space<vmem>>, vector<1x64x128xbf16>,
    %cst_8 = arith.constant 0.000000e+00 : f32
    %11 = vector.broadcast %cst_8 : f32 to vector<1x128xf32>
    %cst_9 = arith.constant 0.000000e+00 : f32
    %12 = vector.broadcast %cst_9 : f32 to vector<1x128xf32>
    %cst_10 = arith.constant dense<0.000000e+00> : vector<128xf32>
    %13 = vector.multi_reduction <add>, %6, %cst_10 [0] : vector<64x128xf32> to vector<128xf32>
    %14 = vector.shape_cast %13 : vector<128xf32> to vector<1x128xf32>
    %15 = arith.addf %11, %14 : vector<1x128xf32>
    %16 = arith.mulf %6, %6 : vector<64x128xf32>
    %cst_11 = arith.constant dense<0.000000e+00> : vector<128xf32>
    %17 = vector.multi_reduction <add>, %16, %cst_11 [0] : vector<64x128xf32> to vector<128xf32>
    %18 = vector.shape_cast %17 : vector<128xf32> to vector<1x128xf32>
    %19 = arith.addf %12, %18 : vector<1x128xf32>
    %c0_12 = arith.constant 0 : index
    %c0_13 = arith.constant 0 : index
    %c0_14 = arith.constant 0 : index
    %20 = vector.load %arg5[%c0_12, %c0_13, %c0_14] : memref<1x1x128xf32, #tpu.memory_space<vmem>>, vector<1x1x128xf32>
    %21 = vector.shape_cast %20 : vector<1x1x128xf32> to vector<1x128xf32>
    %22 = arith.addf %21, %15 : vector<1x128xf32>
    %c0_15 = arith.constant 0 : index
    %c0_16 = arith.constant 0 : index
    %c0_17 = arith.constant 0 : index
    %23 = vector.load %arg5[%c0_15, %c0_16, %c0_17] : memref<1x1x128xf32, #tpu.memory_space<vmem>>, vector<1x1x128xf32>
    %24 = vector.shape_cast %23 : vector<1x1x128xf32> to vector<1x128xf32>
    %25 = vector.shape_cast %22 : vector<1x128xf32> to vector<1x1x128xf32>
    tpu.vector_store %arg5[%c0_15, %c0_16, %c0_17], %25 {strides = array<i32>} : memref<1x1x128xf32, #tpu.memory_space<vmem>>, vector<1x1x128xf32>,
    %c0_18 = arith.constant 0 : index
    %c0_19 = arith.constant 0 : index
    %c0_20 = arith.constant 0 : index
    %26 = vector.load %arg6[%c0_18, %c0_19, %c0_20] : memref<1x1x128xf32, #tpu.memory_space<vmem>>, vector<1x1x128xf32>
    %27 = vector.shape_cast %26 : vector<1x1x128xf32> to vector<1x128xf32>
    %28 = arith.addf %27, %19 : vector<1x128xf32>
    %c0_21 = arith.constant 0 : index
    %c0_22 = arith.constant 0 : index
    %c0_23 = arith.constant 0 : index
    %29 = vector.load %arg6[%c0_21, %c0_22, %c0_23] : memref<1x1x128xf32, #tpu.memory_space<vmem>>, vector<1x1x128xf32>
    %30 = vector.shape_cast %29 : vector<1x1x128xf32> to vector<1x128xf32>
    %31 = vector.shape_cast %28 : vector<1x128xf32> to vector<1x1x128xf32>
    tpu.vector_store %arg6[%c0_21, %c0_22, %c0_23], %31 {strides = array<i32>} : memref<1x1x128xf32, #tpu.memory_space<vmem>>, vector<1x1x128xf32>,
    return
  }
  func.func @transform_0(%arg0: i32, %arg1: i32) -> (i32, i32, i32) {
    %c0_i32 = arith.constant 0 : i32
    %c0_i32_0 = arith.constant 0 : i32
    return %arg0, %arg1, %c0_i32 : i32, i32, i32
  }
  func.func @transform_1(%arg0: i32, %arg1: i32) -> (i32, i32) {
    %c0_i32 = arith.constant 0 : i32
    %c0_i32_0 = arith.constant 0 : i32
    %c0_i32_1 = arith.constant 0 : i32
    return %c0_i32, %c0_i32_0 : i32, i32
  }
  func.func @transform_2(%arg0: i32, %arg1: i32) -> (i32, i32, i32) {
    %c0_i32 = arith.constant 0 : i32
    %c0_i32_0 = arith.constant 0 : i32
    return %arg0, %arg1, %c0_i32 : i32, i32, i32
  }
  func.func @transform_3(%arg0: i32, %arg1: i32) -> (i32, i32, i32) {
    %c0_i32 = arith.constant 0 : i32
    %c0_i32_0 = arith.constant 0 : i32
    %c0_i32_1 = arith.constant 0 : i32
    return %arg0, %c0_i32, %c0_i32_0 : i32, i32, i32
  }
  func.func @transform_4(%arg0: i32, %arg1: i32) -> (i32, i32, i32) {
    %c0_i32 = arith.constant 0 : i32
    %c0_i32_0 = arith.constant 0 : i32
    %c0_i32_1 = arith.constant 0 : i32
    return %arg0, %c0_i32, %c0_i32_0 : i32, i32, i32
  }
}

module attributes {stable_mosaic.version = 11 : i64} {
  func.func @_bn_lrelu_kernel(%arg0: i32, %arg1: i32, %arg2: memref<1x64x128xbf16, #tpu.memory_space<vmem>>, %arg3: memref<1x128xf32, #tpu.memory_space<vmem>>, %arg4: memref<1x128xf32, #tpu.memory_space<vmem>>, %arg5: memref<1x64x128xbf16, #tpu.memory_space<vmem>>) attributes {dimension_semantics = [#tpu.dimension_semantics<parallel>, #tpu.dimension_semantics<parallel>], iteration_bounds = array<i64: 2, 1>, scalar_prefetch = 0 : i64, scratch_operands = 0 : i64, tpu.core_type = #tpu.core_type<tc>, window_params = [{transform_indices = @transform_0, window_bounds = array<i64: 1, 64, 128>}, {pipeline_mode = #tpu.pipeline_mode<synchronous>, transform_indices = @transform_1, window_bounds = array<i64: 1, 128>}, {pipeline_mode = #tpu.pipeline_mode<synchronous>, transform_indices = @transform_2, window_bounds = array<i64: 1, 128>}, {transform_indices = @transform_3, window_bounds = array<i64: 1, 64, 128>}]} {
    %c0 = arith.constant 0 : index
    %c0_0 = arith.constant 0 : index
    %c0_1 = arith.constant 0 : index
    %0 = vector.load %arg2[%c0, %c0_0, %c0_1] : memref<1x64x128xbf16, #tpu.memory_space<vmem>>, vector<1x64x128xbf16>
    %1 = vector.shape_cast %0 : vector<1x64x128xbf16> to vector<64x128xbf16>
    %2 = arith.extf %1 : vector<64x128xbf16> to vector<64x128xf32>
    %c0_2 = arith.constant 0 : index
    %c0_3 = arith.constant 0 : index
    %3 = vector.load %arg3[%c0_2, %c0_3] : memref<1x128xf32, #tpu.memory_space<vmem>>, vector<1x128xf32>
    %4 = vector.broadcast %3 : vector<1x128xf32> to vector<64x128xf32>
    %5 = arith.mulf %2, %4 : vector<64x128xf32>
    %c0_4 = arith.constant 0 : index
    %c0_5 = arith.constant 0 : index
    %6 = vector.load %arg4[%c0_4, %c0_5] : memref<1x128xf32, #tpu.memory_space<vmem>>, vector<1x128xf32>
    %7 = vector.broadcast %6 : vector<1x128xf32> to vector<64x128xf32>
    %8 = arith.addf %5, %7 : vector<64x128xf32>
    %cst = arith.constant 0.000000e+00 : f32
    %9 = vector.broadcast %cst : f32 to vector<64x128xf32>
    %10 = arith.cmpf oge, %8, %9 : vector<64x128xf32>
    %cst_6 = arith.constant 2.000000e-01 : f32
    %11 = vector.broadcast %cst_6 : f32 to vector<64x128xf32>
    %12 = arith.mulf %11, %8 : vector<64x128xf32>
    %13 = arith.select %10, %8, %12 : vector<64x128xi1>, vector<64x128xf32>
    %14 = arith.truncf %13 : vector<64x128xf32> to vector<64x128xbf16>
    %c0_7 = arith.constant 0 : index
    %c0_8 = arith.constant 0 : index
    %c0_9 = arith.constant 0 : index
    %15 = vector.load %arg5[%c0_7, %c0_8, %c0_9] : memref<1x64x128xbf16, #tpu.memory_space<vmem>>, vector<1x64x128xbf16>
    %16 = vector.shape_cast %15 : vector<1x64x128xbf16> to vector<64x128xbf16>
    %17 = vector.shape_cast %14 : vector<64x128xbf16> to vector<1x64x128xbf16>
    tpu.vector_store %arg5[%c0_7, %c0_8, %c0_9], %17 {strides = array<i32>} : memref<1x64x128xbf16, #tpu.memory_space<vmem>>, vector<1x64x128xbf16>,
    return
  }
  func.func @transform_0(%arg0: i32, %arg1: i32) -> (i32, i32, i32) {
    %c0_i32 = arith.constant 0 : i32
    %c0_i32_0 = arith.constant 0 : i32
    return %arg0, %arg1, %c0_i32 : i32, i32, i32
  }
  func.func @transform_1(%arg0: i32, %arg1: i32) -> (i32, i32) {
    %c0_i32 = arith.constant 0 : i32
    %c0_i32_0 = arith.constant 0 : i32
    %c0_i32_1 = arith.constant 0 : i32
    return %c0_i32, %c0_i32_0 : i32, i32
  }
  func.func @transform_2(%arg0: i32, %arg1: i32) -> (i32, i32) {
    %c0_i32 = arith.constant 0 : i32
    %c0_i32_0 = arith.constant 0 : i32
    %c0_i32_1 = arith.constant 0 : i32
    return %c0_i32, %c0_i32_0 : i32, i32
  }
  func.func @transform_3(%arg0: i32, %arg1: i32) -> (i32, i32, i32) {
    %c0_i32 = arith.constant 0 : i32
    %c0_i32_0 = arith.constant 0 : i32
    return %arg0, %arg1, %c0_i32 : i32, i32, i32
  }
}

</mosaic_0001>

<llo_original>
// kernel: conv2d_block.3
$region0: #{conv2d_block.3}
  #allocation0 [shape = 'u32[]', space=smem, size = 0x4, offset = 0x4, fixed_abs, tag = 'smem constant byte address 0x4 - core index']
  #allocation1 [shape = 'u32[144,128]{1,0:T(1,128)}', space=vmem, size = 0x12000, scoped, tag = 'internal scratch']
  %s0 = inlined_call_operand.vmem [shape: bf16[2,64,128], index: 0, kind: input, shape index: {}, may-alias: {0,3}]
  %s1 = inlined_call_operand.vmem [shape: f32[1,128], index: 1, kind: input, shape index: {}]
  %s2 = inlined_call_operand.vmem [shape: f32[1,128], index: 2, kind: input, shape index: {}]
  %s3 = inlined_call_operand.vmem [shape: bf16[2,64,128], index: 3, kind: output, shape index: {}, may-alias: {0,3}]
  %s4 = sld [smem:[#allocation0]]
  $region45: #{conv2d_block.3} parent=0
    _
  %s6 = ssub.s32 1, %s4
  %s7 = scalar_select 0, %s6, %s4
  loop: start=0, step=1, limit=4
  $region2: #{conv2d_block.3} parent=0 // loop_pre_header
    _
  $region3: #{conv2d_block.3} parent=0 // loop_header
    %s9 = sphi 0, %s13
    %p10 = scmp.ge.s32.totalorder %s9, 4
    %s16 = sphi 0, %s28
    %s17 = sphi 0, %s24
    %s18 = sphi 0, %s16
    %s19 = sphi 0, %s17
    %s20 = sphi 0, %s18
    %s21 = sphi 0, %s19
    %s33 = sphi 0, %s35
    %s36 = sphi 0, %s33
    %s37 = sphi 0, %s36
    %s53 = sphi 0, %s37
    %s57 = sphi 0, %s57
    %s59 = sphi 0, %s57
    %s60 = sphi 0, %s59
    %s74 = sphi 0, %s60
    %s78 = sphi 0, %s78
    %s80 = sphi 0, %s78
    %s81 = sphi 0, %s80
    %s95 = sphi 0, %s81
    %s103 = sphi 0, %s105
    %s106 = sphi 0, %s103
    %s107 = sphi 0, %s106
    %s123 = sphi 0, %s107
  $region4: #{conv2d_block.3} parent=0 // loop_header_branch
    %12 = sbr.rel (%p10) target = $region8
  $region5: #{conv2d_block.3} parent=0 // loop_body
    %s14 = ssub.s32 %s9, 1
    %s15 = ssub.s32 %s9, 2
    %s22 = sadd.s32 1, %s17
    %p23 = scmp.ge.s32.totalorder %s22, 1
    %s24 = scalar_select %p23, 0, %s22
    %s25 = sadd.s32 1, %s16
    %s26 = scalar_select %p23, %s25, %s16
    %p27 = scmp.ge.s32.totalorder %s26, 2
    %s28 = scalar_select %p27, 0, %s26
    %s29 = ssub.s32 %s16, %s28
    %s30 = ssub.s32 %s17, %s24
    %s31 = sor.u32 %s29, %s30
    %p32 = scmp.eq.s32.totalorder %s31, 0
    %s34 = sadd.s32 %s33, 1
    %s35 = scalar_select %p32, %s33, %s34
    %p38 = pneg %p32
    %p39 = scmp.eq.s32.totalorder %s9, 1
    %p40 = por %p38, %p39
    %p41 = scmp.ne.s32.totalorder %s33, %s36
    %p42 = scmp.eq.s32.totalorder %s9, 0
    %p43 = por %p41, %p42
    %p44 = scmp.ne.s32.totalorder %s33, %s36
    %p45 = scmp.eq.s32.totalorder %s14, 1
    %p46 = por %p44, %p45
    %p47 = scmp.ne.s32.totalorder %s36, %s37
    %p48 = scmp.eq.s32.totalorder %s14, 0
    %p49 = por %p47, %p48
    %p50 = scmp.ne.s32.totalorder %s36, %s37
    %p51 = scmp.eq.s32.totalorder %s15, 1
    %p52 = por %p50, %p51
    %p54 = scmp.ne.s32.totalorder %s37, %s53
    %p55 = scmp.eq.s32.totalorder %s15, 0
    %p56 = por %p54, %p55
    %s58 = sadd.s32 %s57, 1
    %p61 = scmp.eq.s32.totalorder %s9, 1
    %p62 = scmp.ne.s32.totalorder %s57, %s59
    %p63 = scmp.eq.s32.totalorder %s9, 0
    %p64 = por %p62, %p63
    %p65 = scmp.ne.s32.totalorder %s57, %s59
    %p66 = scmp.eq.s32.totalorder %s14, 1
    %p67 = por %p65, %p66
    %p68 = scmp.ne.s32.totalorder %s59, %s60
    %p69 = scmp.eq.s32.totalorder %s14, 0
    %p70 = por %p68, %p69
    %p71 = scmp.ne.s32.totalorder %s59, %s60
    %p72 = scmp.eq.s32.totalorder %s15, 1
    %p73 = por %p71, %p72
    %p75 = scmp.ne.s32.totalorder %s60, %s74
    %p76 = scmp.eq.s32.totalorder %s15, 0
    %p77 = por %p75, %p76
    %s79 = sadd.s32 %s78, 1
    %p82 = scmp.eq.s32.totalorder %s9, 1
    %p83 = scmp.ne.s32.totalorder %s78, %s80
    %p84 = scmp.eq.s32.totalorder %s9, 0
    %p85 = por %p83, %p84
    %p86 = scmp.ne.s32.totalorder %s78, %s80
    %p87 = scmp.eq.s32.totalorder %s14, 1
    %p88 = por %p86, %p87
    %p89 = scmp.ne.s32.totalorder %s80, %s81
    %p90 = scmp.eq.s32.totalorder %s14, 0
    %p91 = por %p89, %p90
    %p92 = scmp.ne.s32.totalorder %s80, %s81
    %p93 = scmp.eq.s32.totalorder %s15, 1
    %p94 = por %p92, %p93
    %p96 = scmp.ne.s32.totalorder %s81, %s95
    %p97 = scmp.eq.s32.totalorder %s15, 0
    %p98 = por %p96, %p97
    %s99 = ssub.s32 %s16, %s28
    %s100 = ssub.s32 %s17, %s24
    %s101 = sor.u32 %s99, %s100
    %p102 = scmp.eq.s32.totalorder %s101, 0
    %s104 = sadd.s32 %s103, 1
    %s105 = scalar_select %p102, %s103, %s104
    %p108 = pneg %p102
    %p109 = scmp.eq.s32.totalorder %s9, 1
    %p110 = por %p108, %p109
    %p111 = scmp.ne.s32.totalorder %s103, %s106
    %p112 = scmp.eq.s32.totalorder %s9, 0
    %p113 = por %p111, %p112
    %p114 = scmp.ne.s32.totalorder %s103, %s106
    %p115 = scmp.eq.s32.totalorder %s14, 1
    %p116 = por %p114, %p115
    %p117 = scmp.ne.s32.totalorder %s106, %s107
    %p118 = scmp.eq.s32.totalorder %s14, 0
    %p119 = por %p117, %p118
    %p120 = scmp.ne.s32.totalorder %s106, %s107
    %p121 = scmp.eq.s32.totalorder %s15, 1
    %p122 = por %p120, %p121
    %p124 = scmp.ne.s32.totalorder %s107, %s123
    %p125 = scmp.eq.s32.totalorder %s15, 0
    %p126 = por %p124, %p125
    %p127 = scmp.le.s32.totalorder 1, %s9
    %p128 = scmp.lt.s32.totalorder %s9, 3
    %p129 = pnand %p127, %p128
    %p130 = pneg %p129
    // Predicated region
    $region9: #{conv2d_block.3} parent=5 // pred_check
      _
    $region10: #{conv2d_block.3} parent=5 // pred_check_branch
      %132 = sbr.rel (%p129) target = $region12
    $region11: #{conv2d_block.3} parent=5 // pred_region
      %s133 = ssub.s32 %s9, 1
      // Predicated region
      $region13: #{conv2d_block.3} parent=11 // pred_check
        %p134 = pneg %p70
      $region14: #{conv2d_block.3} parent=11 // pred_check_branch
        %136 = sbr.rel (%p134) target = $region16
      $region15: #{conv2d_block.3} parent=11 // pred_region
        _
      $region16: #{conv2d_block.3} parent=11 // pred_fallthru
        _
      // Predicated region
      $region17: #{conv2d_block.3} parent=11 // pred_check
        %p137 = pneg %p91
      $region18: #{conv2d_block.3} parent=11 // pred_check_branch
        %139 = sbr.rel (%p137) target = $region20
      $region19: #{conv2d_block.3} parent=11 // pred_region
        _
      $region20: #{conv2d_block.3} parent=11 // pred_fallthru
        _
    $region12: #{conv2d_block.3} parent=5 // pred_fallthru
      _
    %p140 = scmp.lt.s32.totalorder %s9, 2
    // Predicated region
    $region21: #{conv2d_block.3} parent=5 // pred_check
      %p141 = pneg %p140
    $region22: #{conv2d_block.3} parent=5 // pred_check_branch
      %143 = sbr.rel (%p141) target = $region24
    $region23: #{conv2d_block.3} parent=5 // pred_region
      // Predicated region
      $region25: #{conv2d_block.3} parent=23 // pred_check
        %p144 = pneg %p43
      $region26: #{conv2d_block.3} parent=23 // pred_check_branch
        %146 = sbr.rel (%p144) target = $region28
      $region27: #{conv2d_block.3} parent=23 // pred_region
        %s147 = smul.u32 8, %s17
        %p148 = scmp.lt.s32.totalorder %s16, 1
        %s149 = scalar_select %p148, %s16, 1
        %p150 = scmp.lt.s32.totalorder %s147, 7
        %s151 = scalar_select %p150, %s147, 7
        %s152 = smul.addr %s149, 8
        %s153 = sadd.s32 %s151, %s152
        %s154 = smul.addr %s153, 4
        %s155 = scalar_lea.vmem %s0, %s154
        %s156 = smul.u32 8, %s17
      $region28: #{conv2d_block.3} parent=23 // pred_fallthru
        _
    $region24: #{conv2d_block.3} parent=5 // pred_fallthru
      _
    %p157 = scmp.le.s32.totalorder 1, %s9
    %p158 = scmp.lt.s32.totalorder %s9, 3
    %p159 = pnand %p157, %p158
    %p160 = pneg %p159
    // Predicated region
    $region29: #{conv2d_block.3} parent=5 // pred_check
      _
    $region30: #{conv2d_block.3} parent=5 // pred_check_branch
      %162 = sbr.rel (%p159) target = $region32
    $region31: #{conv2d_block.3} parent=5 // pred_region
      %s163 = ssub.s32 %s9, 1
      %s164 = smul.u32 8, %s19
      %p165 = scmp.lt.s32.totalorder %s18, 1
      %s166 = scalar_select %p165, %s18, 1
      %p167 = scmp.lt.s32.totalorder %s164, 7
      %s168 = scalar_select %p167, %s164, 7
      %s169 = smul.addr %s166, 8
      %s170 = sadd.s32 %s168, %s169
      %s171 = smul.addr %s170, 4
      %s172 = scalar_lea.vmem %s0, %s171
      %p173 = pneg %p49
      %p174 = pneg %p46
      %p175 = pneg %p70
      %p176 = pneg %p67
      %p177 = pneg %p91
      %p178 = pneg %p88
      %p179 = pneg %p119
      %p180 = pneg %p116
      %s181 = smul.u32 8, %s19
      %p182 = scmp.lt.s32.totalorder %s18, 1
      %s183 = scalar_select %p182, %s18, 1
      %p184 = scmp.lt.s32.totalorder %s181, 7
      %s185 = scalar_select %p184, %s181, 7
      %s186 = smul.addr %s183, 8
      %s187 = sadd.s32 %s185, %s186
      %s188 = smul.addr %s187, 4
      %s189 = scalar_lea.vmem %s3, %s188
      %s190 = smul.u32 8, %s19
      %p191 = scmp.lt.s32.totalorder %s18, 1
      %s192 = scalar_select %p191, %s18, 1
      %p193 = scmp.lt.s32.totalorder %s190, 7
      %s194 = scalar_select %p193, %s190, 7
      %s195 = smul.addr %s192, 8
      %s196 = sadd.s32 %s194, %s195
      %s197 = smul.addr %s196, 4
      %s198 = scalar_lea.vmem %s0, %s197
      %s199 = smul.u32 8, %s19
      %s200 = smul.u32 8, %s19
      %p201 = scmp.lt.s32.totalorder %s18, 1
      %s202 = scalar_select %p201, %s18, 1
      %p203 = scmp.lt.s32.totalorder %s200, 7
      %s204 = scalar_select %p203, %s200, 7
      %s205 = smul.addr %s202, 8
      %s206 = sadd.s32 %s204, %s205
      %s207 = smul.addr %s206, 4
      %s208 = scalar_lea.vmem %s3, %s207
      %s209 = smul.u32 8, %s19
      %v210 = vld [vmem:[%s198] sm:$0xf]
      %v211 = vld [vmem:[%s198 + $0x4] sm:$0xf]
      %v212 = vld [vmem:[%s198 + $0x8] sm:$0xf]
      %v213 = vld [vmem:[%s198 + $0xc] sm:$0xf]
      %v214 = vld [vmem:[%s198 + $0x10] sm:$0xf]
      %v215 = vld [vmem:[%s198 + $0x14] sm:$0xf]
      %v216 = vld [vmem:[%s198 + $0x18] sm:$0xf]
      %v217 = vld [vmem:[%s198 + $0x1c] sm:$0xf]
      %v218 = vunpack.c.l.bf16 %v210
      %v219 = vunpack.c.l.bf16 %v211
      %v220 = vunpack.c.l.bf16 %v212
      %v221 = vunpack.c.l.bf16 %v213
      %v222 = vunpack.c.l.bf16 %v214
      %v223 = vunpack.c.l.bf16 %v215
      %v224 = vunpack.c.l.bf16 %v216
      %v225 = vunpack.c.l.bf16 %v217
      %v226 = vld [vmem:[%s1] sm:$0x1]
      %v228 = vlaneseq
      %v229 = vshrl.u32 %v228, 7
      %v230 = vsub.s32 0, %v229
      %v231 = vrot.slane %v226, %v230
      %v233 = vmul.f32 %v218, %v231
      %v234 = vmul.f32 %v219, %v231
      %v235 = vmul.f32 %v220, %v231
      %v236 = vmul.f32 %v221, %v231
      %v237 = vmul.f32 %v222, %v231
      %v238 = vmul.f32 %v223, %v231
      %v239 = vmul.f32 %v224, %v231
      %v240 = vmul.f32 %v225, %v231
      %v241 = vld [vmem:[%s2] sm:$0x1]
      %v243 = vlaneseq
      %v244 = vshrl.u32 %v243, 7
      %v245 = vsub.s32 0, %v244
      %v246 = vrot.slane %v241, %v245
      %v248 = vadd.f32 %v233, %v246
      %v249 = vadd.f32 %v234, %v246
      %v250 = vadd.f32 %v235, %v246
      %v251 = vadd.f32 %v236, %v246
      %v252 = vadd.f32 %v237, %v246
      %v253 = vadd.f32 %v238, %v246
      %v254 = vadd.f32 %v239, %v246
      %v255 = vadd.f32 %v240, %v246
      %vm256 = vcmp.ge.f32.partialorder %v248, 0.0
      %vm257 = vcmp.ge.f32.partialorder %v249, 0.0
      %vm258 = vcmp.ge.f32.partialorder %v250, 0.0
      %vm259 = vcmp.ge.f32.partialorder %v251, 0.0
      %vm260 = vcmp.ge.f32.partialorder %v252, 0.0
      %vm261 = vcmp.ge.f32.partialorder %v253, 0.0
      %vm262 = vcmp.ge.f32.partialorder %v254, 0.0
      %vm263 = vcmp.ge.f32.partialorder %v255, 0.0
      %v264 = vmul.f32 %v248, 0.2
      %v265 = vmul.f32 %v249, 0.2
      %v266 = vmul.f32 %v250, 0.2
      %v267 = vmul.f32 %v251, 0.2
      %v268 = vmul.f32 %v252, 0.2
      %v269 = vmul.f32 %v253, 0.2
      %v270 = vmul.f32 %v254, 0.2
      %v271 = vmul.f32 %v255, 0.2
      %v272 = vsel %vm256, %v248, %v264
      %v273 = vsel %vm257, %v249, %v265
      %v274 = vsel %vm258, %v250, %v266
      %v275 = vsel %vm259, %v251, %v267
      %v276 = vsel %vm260, %v252, %v268
      %v277 = vsel %vm261, %v253, %v269
      %v278 = vsel %vm262, %v254, %v270
      %v279 = vsel %vm263, %v255, %v271
      %v280 = vpack.c.bf16 %v273, %v272
      %v281 = vpack.c.bf16 %v275, %v274
      %v282 = vpack.c.bf16 %v277, %v276
      %v283 = vpack.c.bf16 %v279, %v278
      %v288 = vunpack.c.l.b16 %v280
      %v289 = vunpack.c.h.b16 %v280
      %v290 = vunpack.c.l.b16 %v281
      %v291 = vunpack.c.h.b16 %v281
      %v292 = vunpack.c.l.b16 %v282
      %v293 = vunpack.c.h.b16 %v282
      %v294 = vunpack.c.l.b16 %v283
      %v295 = vunpack.c.h.b16 %v283
      %v296 = vpack.c.b16 %v288, %v288
      %v297 = vpack.c.b16 %v289, %v289
      %v298 = vpack.c.b16 %v290, %v290
      %v299 = vpack.c.b16 %v291, %v291
      %v300 = vpack.c.b16 %v292, %v292
      %v301 = vpack.c.b16 %v293, %v293
      %v302 = vpack.c.b16 %v294, %v294
      %v303 = vpack.c.b16 %v295, %v295
      %312 = vst [vmem:[%s208] sm:$0xf] %v296
      %313 = vst [vmem:[%s208 + $0x4] sm:$0xf] %v297
      %314 = vst [vmem:[%s208 + $0x8] sm:$0xf] %v298
      %315 = vst [vmem:[%s208 + $0xc] sm:$0xf] %v299
      %316 = vst [vmem:[%s208 + $0x10] sm:$0xf] %v300
      %317 = vst [vmem:[%s208 + $0x14] sm:$0xf] %v301
      %318 = vst [vmem:[%s208 + $0x18] sm:$0xf] %v302
      %319 = vst [vmem:[%s208 + $0x1c] sm:$0xf] %v303
      %s320 = smul.u32 8, %s19
      %p321 = scmp.lt.s32.totalorder %s18, 1
      %s322 = scalar_select %p321, %s18, 1
      %p323 = scmp.lt.s32.totalorder %s320, 7
      %s324 = scalar_select %p323, %s320, 7
      %s325 = smul.addr %s322, 8
      %s326 = sadd.s32 %s324, %s325
      %s327 = smul.addr %s326, 4
      %s328 = scalar_lea.vmem %s3, %s327
      // Predicated region
      $region33: #{conv2d_block.3} parent=31 // pred_check
        %p329 = pneg %p116
      $region34: #{conv2d_block.3} parent=31 // pred_check_branch
        %331 = sbr.rel (%p329) target = $region36
      $region35: #{conv2d_block.3} parent=31 // pred_region
        %s332 = smul.u32 8, %s19
      $region36: #{conv2d_block.3} parent=31 // pred_fallthru
        _
    $region32: #{conv2d_block.3} parent=5 // pred_fallthru
      _
    %p333 = scmp.le.s32.totalorder 2, %s9
    // Predicated region
    $region37: #{conv2d_block.3} parent=5 // pred_check
      %p334 = pneg %p333
    $region38: #{conv2d_block.3} parent=5 // pred_check_branch
      %336 = sbr.rel (%p334) target = $region40
    $region39: #{conv2d_block.3} parent=5 // pred_region
      %s337 = ssub.s32 %s9, 2
      // Predicated region
      $region41: #{conv2d_block.3} parent=39 // pred_check
        %p338 = pneg %p122
      $region42: #{conv2d_block.3} parent=39 // pred_check_branch
        %340 = sbr.rel (%p338) target = $region44
      $region43: #{conv2d_block.3} parent=39 // pred_region
        %s341 = smul.u32 8, %s21
        %p342 = scmp.lt.s32.totalorder %s20, 1
        %s343 = scalar_select %p342, %s20, 1
        %p344 = scmp.lt.s32.totalorder %s341, 7
        %s345 = scalar_select %p344, %s341, 7
        %s346 = smul.addr %s343, 8
        %s347 = sadd.s32 %s345, %s346
        %s348 = smul.addr %s347, 4
        %s349 = scalar_lea.vmem %s3, %s348
      $region44: #{conv2d_block.3} parent=39 // pred_fallthru
        _
    $region40: #{conv2d_block.3} parent=5 // pred_fallthru
      _
  $region6: #{conv2d_block.3} parent=0 // loop_footer
    %s13 = sadd.s32 1, %s9
  $region7: #{conv2d_block.3} parent=0 // loop_footer_branch
    %8 = sbr.rel target = $region3
  $region8: #{conv2d_block.3} parent=0 // loop_exit
    _

// kernel: conv2d_block.2
$region0: #{conv2d_block.2}
  #allocation0 [shape = 'u32[]', space=smem, size = 0x4, offset = 0x4, fixed_abs, tag = 'smem constant byte address 0x4 - core index']
  #allocation1 [shape = 'u32[144,128]{1,0:T(1,128)}', space=vmem, size = 0x12000, scoped, tag = 'internal scratch']
  %s0 = inlined_call_operand.vmem [shape: bf16[2,64,64], index: 0, kind: input, shape index: {}]
  %s1 = inlined_call_operand.vmem [shape: bf16[64,128], index: 1, kind: input, shape index: {}]
  %s2 = inlined_call_operand.vmem [shape: bf16[2,64,128], index: 2, kind: output, shape index: {0}]
  %s3 = inlined_call_operand.vmem [shape: f32[2,1,128], index: 3, kind: output, shape index: {1}]
  %s4 = inlined_call_operand.vmem [shape: f32[2,1,128], index: 4, kind: output, shape index: {2}]
  %5 = xla_tuple %s2, %s3, %s4
  %s6 = sld [smem:[#allocation0]]
  $region61: #{conv2d_block.2} parent=0
    _
  %s8 = ssub.s32 1, %s6
  %s9 = scalar_select 0, %s8, %s6
  loop: start=0, step=1, limit=4
  $region2: #{conv2d_block.2} parent=0 // loop_pre_header
    _
  $region3: #{conv2d_block.2} parent=0 // loop_header
    %s11 = sphi 0, %s15
    %p12 = scmp.ge.s32.totalorder %s11, 4
    %s18 = sphi 0, %s30
    %s19 = sphi 0, %s26
    %s20 = sphi 0, %s18
    %s21 = sphi 0, %s19
    %s22 = sphi 0, %s20
    %s23 = sphi 0, %s21
    %s35 = sphi 0, %s37
    %s38 = sphi 0, %s35
    %s39 = sphi 0, %s38
    %s55 = sphi 0, %s39
    %s59 = sphi 0, %s59
    %s61 = sphi 0, %s59
    %s62 = sphi 0, %s61
    %s76 = sphi 0, %s62
    %s84 = sphi 0, %s86
    %s87 = sphi 0, %s84
    %s88 = sphi 0, %s87
    %s104 = sphi 0, %s88
    %s110 = sphi 0, %s112
    %s113 = sphi 0, %s110
    %s114 = sphi 0, %s113
    %s130 = sphi 0, %s114
    %s136 = sphi 0, %s138
    %s139 = sphi 0, %s136
    %s140 = sphi 0, %s139
    %s156 = sphi 0, %s140
  $region4: #{conv2d_block.2} parent=0 // loop_header_branch
    %14 = sbr.rel (%p12) target = $region8
  $region5: #{conv2d_block.2} parent=0 // loop_body
    %s16 = ssub.s32 %s11, 1
    %s17 = ssub.s32 %s11, 2
    %s24 = sadd.s32 1, %s19
    %p25 = scmp.ge.s32.totalorder %s24, 1
    %s26 = scalar_select %p25, 0, %s24
    %s27 = sadd.s32 1, %s18
    %s28 = scalar_select %p25, %s27, %s18
    %p29 = scmp.ge.s32.totalorder %s28, 2
    %s30 = scalar_select %p29, 0, %s28
    %s31 = ssub.s32 %s18, %s30
    %s32 = ssub.s32 %s19, %s26
    %s33 = sor.u32 %s31, %s32
    %p34 = scmp.eq.s32.totalorder %s33, 0
    %s36 = sadd.s32 %s35, 1
    %s37 = scalar_select %p34, %s35, %s36
    %p40 = pneg %p34
    %p41 = scmp.eq.s32.totalorder %s11, 1
    %p42 = por %p40, %p41
    %p43 = scmp.ne.s32.totalorder %s35, %s38
    %p44 = scmp.eq.s32.totalorder %s11, 0
    %p45 = por %p43, %p44
    %p46 = scmp.ne.s32.totalorder %s35, %s38
    %p47 = scmp.eq.s32.totalorder %s16, 1
    %p48 = por %p46, %p47
    %p49 = scmp.ne.s32.totalorder %s38, %s39
    %p50 = scmp.eq.s32.totalorder %s16, 0
    %p51 = por %p49, %p50
    %p52 = scmp.ne.s32.totalorder %s38, %s39
    %p53 = scmp.eq.s32.totalorder %s17, 1
    %p54 = por %p52, %p53
    %p56 = scmp.ne.s32.totalorder %s39, %s55
    %p57 = scmp.eq.s32.totalorder %s17, 0
    %p58 = por %p56, %p57
    %s60 = sadd.s32 %s59, 1
    %p63 = scmp.eq.s32.totalorder %s11, 1
    %p64 = scmp.ne.s32.totalorder %s59, %s61
    %p65 = scmp.eq.s32.totalorder %s11, 0
    %p66 = por %p64, %p65
    %p67 = scmp.ne.s32.totalorder %s59, %s61
    %p68 = scmp.eq.s32.totalorder %s16, 1
    %p69 = por %p67, %p68
    %p70 = scmp.ne.s32.totalorder %s61, %s62
    %p71 = scmp.eq.s32.totalorder %s16, 0
    %p72 = por %p70, %p71
    %p73 = scmp.ne.s32.totalorder %s61, %s62
    %p74 = scmp.eq.s32.totalorder %s17, 1
    %p75 = por %p73, %p74
    %p77 = scmp.ne.s32.totalorder %s62, %s76
    %p78 = scmp.eq.s32.totalorder %s17, 0
    %p79 = por %p77, %p78
    %s80 = ssub.s32 %s18, %s30
    %s81 = ssub.s32 %s19, %s26
    %s82 = sor.u32 %s80, %s81
    %p83 = scmp.eq.s32.totalorder %s82, 0
    %s85 = sadd.s32 %s84, 1
    %s86 = scalar_select %p83, %s84, %s85
    %p89 = pneg %p83
    %p90 = scmp.eq.s32.totalorder %s11, 1
    %p91 = por %p89, %p90
    %p92 = scmp.ne.s32.totalorder %s84, %s87
    %p93 = scmp.eq.s32.totalorder %s11, 0
    %p94 = por %p92, %p93
    %p95 = scmp.ne.s32.totalorder %s84, %s87
    %p96 = scmp.eq.s32.totalorder %s16, 1
    %p97 = por %p95, %p96
    %p98 = scmp.ne.s32.totalorder %s87, %s88
    %p99 = scmp.eq.s32.totalorder %s16, 0
    %p100 = por %p98, %p99
    %p101 = scmp.ne.s32.totalorder %s87, %s88
    %p102 = scmp.eq.s32.totalorder %s17, 1
    %p103 = por %p101, %p102
    %p105 = scmp.ne.s32.totalorder %s88, %s104
    %p106 = scmp.eq.s32.totalorder %s17, 0
    %p107 = por %p105, %p106
    %s108 = ssub.s32 %s18, %s30
    %p109 = scmp.eq.s32.totalorder %s108, 0
    %s111 = sadd.s32 %s110, 1
    %s112 = scalar_select %p109, %s110, %s111
    %p115 = pneg %p109
    %p116 = scmp.eq.s32.totalorder %s11, 1
    %p117 = por %p115, %p116
    %p118 = scmp.ne.s32.totalorder %s110, %s113
    %p119 = scmp.eq.s32.totalorder %s11, 0
    %p120 = por %p118, %p119
    %p121 = scmp.ne.s32.totalorder %s110, %s113
    %p122 = scmp.eq.s32.totalorder %s16, 1
    %p123 = por %p121, %p122
    %p124 = scmp.ne.s32.totalorder %s113, %s114
    %p125 = scmp.eq.s32.totalorder %s16, 0
    %p126 = por %p124, %p125
    %p127 = scmp.ne.s32.totalorder %s113, %s114
    %p128 = scmp.eq.s32.totalorder %s17, 1
    %p129 = por %p127, %p128
    %p131 = scmp.ne.s32.totalorder %s114, %s130
    %p132 = scmp.eq.s32.totalorder %s17, 0
    %p133 = por %p131, %p132
    %s134 = ssub.s32 %s18, %s30
    %p135 = scmp.eq.s32.totalorder %s134, 0
    %s137 = sadd.s32 %s136, 1
    %s138 = scalar_select %p135, %s136, %s137
    %p141 = pneg %p135
    %p142 = scmp.eq.s32.totalorder %s11, 1
    %p143 = por %p141, %p142
    %p144 = scmp.ne.s32.totalorder %s136, %s139
    %p145 = scmp.eq.s32.totalorder %s11, 0
    %p146 = por %p144, %p145
    %p147 = scmp.ne.s32.totalorder %s136, %s139
    %p148 = scmp.eq.s32.totalorder %s16, 1
    %p149 = por %p147, %p148
    %p150 = scmp.ne.s32.totalorder %s139, %s140
    %p151 = scmp.eq.s32.totalorder %s16, 0
    %p152 = por %p150, %p151
    %p153 = scmp.ne.s32.totalorder %s139, %s140
    %p154 = scmp.eq.s32.totalorder %s17, 1
    %p155 = por %p153, %p154
    %p157 = scmp.ne.s32.totalorder %s140, %s156
    %p158 = scmp.eq.s32.totalorder %s17, 0
    %p159 = por %p157, %p158
    %p160 = scmp.le.s32.totalorder 1, %s11
    %p161 = scmp.lt.s32.totalorder %s11, 3
    %p162 = pnand %p160, %p161
    %p163 = pneg %p162
    // Predicated region
    $region9: #{conv2d_block.2} parent=5 // pred_check
      _
    $region10: #{conv2d_block.2} parent=5 // pred_check_branch
      %165 = sbr.rel (%p162) target = $region12
    $region11: #{conv2d_block.2} parent=5 // pred_region
      %s166 = ssub.s32 %s11, 1
      // Predicated region
      $region13: #{conv2d_block.2} parent=11 // pred_check
        %p167 = pneg %p72
      $region14: #{conv2d_block.2} parent=11 // pred_check_branch
        %169 = sbr.rel (%p167) target = $region16
      $region15: #{conv2d_block.2} parent=11 // pred_region
        _
      $region16: #{conv2d_block.2} parent=11 // pred_fallthru
        _
    $region12: #{conv2d_block.2} parent=5 // pred_fallthru
      _
    %p170 = scmp.lt.s32.totalorder %s11, 2
    // Predicated region
    $region17: #{conv2d_block.2} parent=5 // pred_check
      %p171 = pneg %p170
    $region18: #{conv2d_block.2} parent=5 // pred_check_branch
      %173 = sbr.rel (%p171) target = $region20
    $region19: #{conv2d_block.2} parent=5 // pred_region
      // Predicated region
      $region21: #{conv2d_block.2} parent=19 // pred_check
        %p174 = pneg %p45
      $region22: #{conv2d_block.2} parent=19 // pred_check_branch
        %176 = sbr.rel (%p174) target = $region24
      $region23: #{conv2d_block.2} parent=19 // pred_region
        %s177 = smul.u32 8, %s19
        %p178 = scmp.lt.s32.totalorder %s18, 1
        %s179 = scalar_select %p178, %s18, 1
        %p180 = scmp.lt.s32.totalorder %s177, 7
        %s181 = scalar_select %p180, %s177, 7
        %s182 = smul.addr %s179, 8
        %s183 = sadd.s32 %s181, %s182
        %s184 = smul.addr %s183, 4
        %s185 = scalar_lea.vmem %s0, %s184
        %s186 = smul.u32 8, %s19
      $region24: #{conv2d_block.2} parent=19 // pred_fallthru
        _
    $region20: #{conv2d_block.2} parent=5 // pred_fallthru
      _
    %p187 = scmp.le.s32.totalorder 1, %s11
    %p188 = scmp.lt.s32.totalorder %s11, 3
    %p189 = pnand %p187, %p188
    %p190 = pneg %p189
    // Predicated region
    $region25: #{conv2d_block.2} parent=5 // pred_check
      _
    $region26: #{conv2d_block.2} parent=5 // pred_check_branch
      %192 = sbr.rel (%p189) target = $region28
    $region27: #{conv2d_block.2} parent=5 // pred_region
      %s193 = ssub.s32 %s11, 1
      %s194 = smul.u32 8, %s21
      %p195 = scmp.lt.s32.totalorder %s20, 1
      %s196 = scalar_select %p195, %s20, 1
      %p197 = scmp.lt.s32.totalorder %s194, 7
      %s198 = scalar_select %p197, %s194, 7
      %s199 = smul.addr %s196, 8
      %s200 = sadd.s32 %s198, %s199
      %s201 = smul.addr %s200, 4
      %s202 = scalar_lea.vmem %s0, %s201
      %p203 = pneg %p51
      %p204 = pneg %p48
      %p205 = pneg %p72
      %p206 = pneg %p69
      %p207 = pneg %p100
      %p208 = pneg %p97
      %s209 = smul.u32 8, %s21
      %p210 = scmp.lt.s32.totalorder %s20, 1
      %s211 = scalar_select %p210, %s20, 1
      %p212 = scmp.lt.s32.totalorder %s209, 7
      %s213 = scalar_select %p212, %s209, 7
      %s214 = smul.addr %s211, 8
      %s215 = sadd.s32 %s213, %s214
      %s216 = smul.addr %s215, 4
      %s217 = scalar_lea.vmem %s2, %s216
      %p218 = pneg %p126
      %p219 = pneg %p123
      %p220 = scmp.lt.s32.totalorder %s20, 1
      %s221 = scalar_select %p220, %s20, 1
      %s222 = scalar_lea.vmem %s3, %s221
      %p223 = pneg %p152
      %p224 = pneg %p149
      %p225 = scmp.lt.s32.totalorder %s20, 1
      %s226 = scalar_select %p225, %s20, 1
      %s227 = scalar_lea.vmem %s4, %s226
      %s228 = smul.u32 8, %s21
      %p229 = scmp.lt.s32.totalorder %s20, 1
      %s230 = scalar_select %p229, %s20, 1
      %p231 = scmp.lt.s32.totalorder %s228, 7
      %s232 = scalar_select %p231, %s228, 7
      %s233 = smul.addr %s230, 8
      %s234 = sadd.s32 %s232, %s233
      %s235 = smul.addr %s234, 4
      %s236 = scalar_lea.vmem %s0, %s235
      %s237 = smul.u32 8, %s21
      %s238 = smul.u32 8, %s21
      %p239 = scmp.lt.s32.totalorder %s20, 1
      %s240 = scalar_select %p239, %s20, 1
      %p241 = scmp.lt.s32.totalorder %s238, 7
      %s242 = scalar_select %p241, %s238, 7
      %s243 = smul.addr %s240, 8
      %s244 = sadd.s32 %s242, %s243
      %s245 = smul.addr %s244, 4
      %s246 = scalar_lea.vmem %s2, %s245
      %s247 = smul.u32 8, %s21
      %p248 = scmp.lt.s32.totalorder %s20, 1
      %s249 = scalar_select %p248, %s20, 1
      %s250 = scalar_lea.vmem %s3, %s249
      %p251 = scmp.lt.s32.totalorder %s20, 1
      %s252 = scalar_select %p251, %s20, 1
      %s253 = scalar_lea.vmem %s4, %s252
      %p255 = scmp.eq.s32.totalorder %s21, 0
      // Predicated region
      $region29: #{conv2d_block.2} parent=27 // pred_check
        %p256 = pneg %p255
      $region30: #{conv2d_block.2} parent=27 // pred_check_branch
        %258 = sbr.rel (%p256) target = $region32
      $region31: #{conv2d_block.2} parent=27 // pred_region
        %259 = vst [vmem:[%s250] sm:$0x1] 0.0
        %260 = vst [vmem:[%s253] sm:$0x1] 0.0
      $region32: #{conv2d_block.2} parent=27 // pred_fallthru
        _
      %v261 = vld [vmem:[%s236] sm:$0xf]
      %v262 = vld [vmem:[%s236 + $0x4] sm:$0xf]
      %v263 = vld [vmem:[%s236 + $0x8] sm:$0xf]
      %v264 = vld [vmem:[%s236 + $0xc] sm:$0xf]
      %v265 = vld [vmem:[%s236 + $0x10] sm:$0xf]
      %v266 = vld [vmem:[%s236 + $0x14] sm:$0xf]
      %v267 = vld [vmem:[%s236 + $0x18] sm:$0xf]
      %v268 = vld [vmem:[%s236 + $0x1c] sm:$0xf]
      %v269 = vld [vmem:[%s1] sm:$0xf]
      %v270 = vld [vmem:[%s1 + $0x4] sm:$0xf]
      %v271 = vld [vmem:[%s1 + $0x8] sm:$0xf]
      %v272 = vld [vmem:[%s1 + $0xc] sm:$0xf]
      %v273 = vld [vmem:[%s1 + $0x10] sm:$0xf]
      %v274 = vld [vmem:[%s1 + $0x14] sm:$0xf]
      %v275 = vld [vmem:[%s1 + $0x18] sm:$0xf]
      %v276 = vld [vmem:[%s1 + $0x1c] sm:$0xf]
      %v285 = vunpack.c.l.b16 %v261
      %v286 = vunpack.c.l.b16 %v262
      %v287 = vunpack.c.l.b16 %v263
      %v288 = vunpack.c.l.b16 %v264
      %v289 = vunpack.c.l.b16 %v265
      %v290 = vunpack.c.l.b16 %v266
      %v291 = vunpack.c.l.b16 %v267
      %v292 = vunpack.c.l.b16 %v268
      %v293 = vpack.c.b16 %v286, %v285
      %v294 = vpack.c.b16 %v288, %v287
      %v295 = vpack.c.b16 %v290, %v289
      %v296 = vpack.c.b16 %v292, %v291
      %v305 = vunpack.c.l.b16 %v269
      %v306 = vunpack.c.l.b16 %v270
      %v307 = vunpack.c.l.b16 %v271
      %v308 = vunpack.c.l.b16 %v272
      %v309 = vunpack.c.l.b16 %v273
      %v310 = vunpack.c.l.b16 %v274
      %v311 = vunpack.c.l.b16 %v275
      %v312 = vunpack.c.l.b16 %v276
      %v313 = vpack.c.b16 %v306, %v305
      %v314 = vpack.c.b16 %v308, %v307
      %v315 = vpack.c.b16 %v310, %v309
      %v316 = vpack.c.b16 %v312, %v311
      %vm321 = vcmask 523264
      %v323 = vsel %vm321, %v293, 0
      %v326 = vsel %vm321, %v294, 0
      %v329 = vsel %vm321, %v295, 0
      %v332 = vsel %vm321, %v296, 0
      %334 = vmatprep.subr.bf16.mxu0 0
      %335 = vmatpush1.bf16.msra.mxu0 %v313
      %336 = vmatprep.subr.bf16.mxu0 0
      %337 = vmatpush1.bf16.msra.mxu0 %v314
      %338 = vmatprep.subr.bf16.mxu0 0
      %339 = vmatpush1.bf16.msra.mxu0 %v315
      %340 = vmatprep.subr.bf16.mxu0 0
      %341 = vmatpush1.bf16.msra.mxu0 %v316
      %342 = vmatprep.subr.bf16.mxu0 0
      %343 = vmatpush1.bf16.msra.mxu0 0
      %344 = vmatprep.subr.bf16.mxu0 0
      %345 = vmatpush1.bf16.msra.mxu0 0
      %346 = vmatprep.subr.bf16.mxu0 0
      %347 = vmatpush1.bf16.msra.mxu0 0
      %348 = vmatprep.subr.bf16.mxu0 0
      %349 = vmatpush1.bf16.msra.mxu0 0
      %350 = vmatprep.subr.bf16.mxu0 0
      %351 = vmatpush1.bf16.msra.mxu0 0
      %352 = vmatprep.subr.bf16.mxu0 0
      %353 = vmatpush1.bf16.msra.mxu0 0
      %354 = vmatprep.subr.bf16.mxu0 0
      %355 = vmatpush1.bf16.msra.mxu0 0
      %356 = vmatprep.subr.bf16.mxu0 0
      %357 = vmatpush1.bf16.msra.mxu0 0
      %358 = vmatprep.subr.bf16.mxu0 0
      %359 = vmatpush1.bf16.msra.mxu0 0
      %360 = vmatprep.subr.bf16.mxu0 0
      %361 = vmatpush1.bf16.msra.mxu0 0
      %362 = vmatprep.subr.bf16.mxu0 0
      %363 = vmatpush1.bf16.msra.mxu0 0
      %364 = vmatprep.subr.bf16.mxu0 0
      %365 = vmatpush1.bf16.msra.mxu0 0
      %366 = vmatprep.mubr.bf16.mxu0 0
      %367 = vmatmul.mubr.bf16.gmra.mrb[0].mxu0 %v323
      %v368 = vpop.f32.mrb[0].mxu0
      %v369 = vadd.f32 0.0, %v368
      %v370 = vpop.f32.mrb[0].mxu0
      %v371 = vpop.f32.mrb[0].mxu0
      %v372 = vadd.f32 0.0, %v371
      %v373 = vpop.f32.mrb[0].mxu0
      %374 = vmatprep.mubr.bf16.mxu0 0
      %375 = vmatmul.mubr.bf16.gmra.mrb[0].mxu0 %v326
      %v376 = vpop.f32.mrb[0].mxu0
      %v377 = vadd.f32 0.0, %v376
      %v378 = vpop.f32.mrb[0].mxu0
      %v379 = vpop.f32.mrb[0].mxu0
      %v380 = vadd.f32 0.0, %v379
      %v381 = vpop.f32.mrb[0].mxu0
      %382 = vmatprep.mubr.bf16.mxu0 0
      %383 = vmatmul.mubr.bf16.gmra.mrb[0].mxu0 %v329
      %v384 = vpop.f32.mrb[0].mxu0
      %v385 = vadd.f32 0.0, %v384
      %v386 = vpop.f32.mrb[0].mxu0
      %v387 = vpop.f32.mrb[0].mxu0
      %v388 = vadd.f32 0.0, %v387
      %v389 = vpop.f32.mrb[0].mxu0
      %390 = vmatprep.mubr.bf16.mxu0 0
      %391 = vmatmul.mubr.bf16.gmra.mrb[0].mxu0 %v332
      %v392 = vpop.f32.mrb[0].mxu0
      %v393 = vadd.f32 0.0, %v392
      %v394 = vpop.f32.mrb[0].mxu0
      %v395 = vpop.f32.mrb[0].mxu0
      %v396 = vadd.f32 0.0, %v395
      %v397 = vpop.f32.mrb[0].mxu0
      %398 = vdwg.mxu0
      %v399 = vpack.c.bf16 %v372, %v369
      %v400 = vpack.c.bf16 %v380, %v377
      %v401 = vpack.c.bf16 %v388, %v385
      %v402 = vpack.c.bf16 %v396, %v393
      %v407 = vunpack.c.l.b16 %v399
      %v408 = vunpack.c.h.b16 %v399
      %v409 = vunpack.c.l.b16 %v400
      %v410 = vunpack.c.h.b16 %v400
      %v411 = vunpack.c.l.b16 %v401
      %v412 = vunpack.c.h.b16 %v401
      %v413 = vunpack.c.l.b16 %v402
      %v414 = vunpack.c.h.b16 %v402
      %v415 = vpack.c.b16 %v407, %v407
      %v416 = vpack.c.b16 %v408, %v408
      %v417 = vpack.c.b16 %v409, %v409
      %v418 = vpack.c.b16 %v410, %v410
      %v419 = vpack.c.b16 %v411, %v411
      %v420 = vpack.c.b16 %v412, %v412
      %v421 = vpack.c.b16 %v413, %v413
      %v422 = vpack.c.b16 %v414, %v414
      %431 = vst [vmem:[%s246] sm:$0xf] %v415
      %432 = vst [vmem:[%s246 + $0x4] sm:$0xf] %v416
      %433 = vst [vmem:[%s246 + $0x8] sm:$0xf] %v417
      %434 = vst [vmem:[%s246 + $0xc] sm:$0xf] %v418
      %435 = vst [vmem:[%s246 + $0x10] sm:$0xf] %v419
      %436 = vst [vmem:[%s246 + $0x14] sm:$0xf] %v420
      %437 = vst [vmem:[%s246 + $0x18] sm:$0xf] %v421
      %438 = vst [vmem:[%s246 + $0x1c] sm:$0xf] %v422
      %v439 = vadd.f32 %v369, %v372
      %v440 = vadd.f32 %v439, %v377
      %v441 = vadd.f32 %v440, %v380
      %v442 = vadd.f32 %v441, %v385
      %v443 = vadd.f32 %v442, %v388
      %v444 = vadd.f32 %v443, %v393
      %v445 = vadd.f32 %v444, %v396
      %v446 = vrot.slane %v445, 4
      %v447 = vadd.f32 %v445, %v446
      %v448 = vrot.slane %v447, 2
      %v449 = vadd.f32 %v447, %v448
      %v450 = vrot.slane %v449, 1
      %v451 = vadd.f32 %v449, %v450
      %v452 = vadd.f32 %v451, 0.0
      %v453 = vmul.f32 %v369, %v369
      %v454 = vmul.f32 %v372, %v372
      %v455 = vmul.f32 %v377, %v377
      %v456 = vmul.f32 %v380, %v380
      %v457 = vmul.f32 %v385, %v385
      %v458 = vmul.f32 %v388, %v388
      %v459 = vmul.f32 %v393, %v393
      %v460 = vmul.f32 %v396, %v396
      %v461 = vadd.f32 %v453, %v454
      %v462 = vadd.f32 %v461, %v455
      %v463 = vadd.f32 %v462, %v456
      %v464 = vadd.f32 %v463, %v457
      %v465 = vadd.f32 %v464, %v458
      %v466 = vadd.f32 %v465, %v459
      %v467 = vadd.f32 %v466, %v460
      %v468 = vrot.slane %v467, 4
      %v469 = vadd.f32 %v467, %v468
      %v470 = vrot.slane %v469, 2
      %v471 = vadd.f32 %v469, %v470
      %v472 = vrot.slane %v471, 1
      %v473 = vadd.f32 %v471, %v472
      %v474 = vadd.f32 %v473, 0.0
      %v475 = vld [vmem:[%s250] sm:$0x1]
      %v476 = vadd.f32 %v475, %v452
      %477 = vst [vmem:[%s250] sm:$0x1] %v476
      %v478 = vld [vmem:[%s253] sm:$0x1]
      %v479 = vadd.f32 %v478, %v474
      %480 = vst [vmem:[%s253] sm:$0x1] %v479
      %s481 = smul.u32 8, %s21
      %p482 = scmp.lt.s32.totalorder %s20, 1
      %s483 = scalar_select %p482, %s20, 1
      %p484 = scmp.lt.s32.totalorder %s481, 7
      %s485 = scalar_select %p484, %s481, 7
      %s486 = smul.addr %s483, 8
      %s487 = sadd.s32 %s485, %s486
      %s488 = smul.addr %s487, 4
      %s489 = scalar_lea.vmem %s2, %s488
      %p490 = scmp.lt.s32.totalorder %s20, 1
      %s491 = scalar_select %p490, %s20, 1
      %s492 = scalar_lea.vmem %s3, %s491
      %p493 = scmp.lt.s32.totalorder %s20, 1
      %s494 = scalar_select %p493, %s20, 1
      %s495 = scalar_lea.vmem %s4, %s494
      // Predicated region
      $region33: #{conv2d_block.2} parent=27 // pred_check
        %p496 = pneg %p97
      $region34: #{conv2d_block.2} parent=27 // pred_check_branch
        %498 = sbr.rel (%p496) target = $region36
      $region35: #{conv2d_block.2} parent=27 // pred_region
        %s499 = smul.u32 8, %s21
      $region36: #{conv2d_block.2} parent=27 // pred_fallthru
        _
      // Predicated region
      $region37: #{conv2d_block.2} parent=27 // pred_check
        %p500 = pneg %p123
      $region38: #{conv2d_block.2} parent=27 // pred_check_branch
        %502 = sbr.rel (%p500) target = $region40
      $region39: #{conv2d_block.2} parent=27 // pred_region
        _
      $region40: #{conv2d_block.2} parent=27 // pred_fallthru
        _
      // Predicated region
      $region41: #{conv2d_block.2} parent=27 // pred_check
        %p503 = pneg %p149
      $region42: #{conv2d_block.2} parent=27 // pred_check_branch
        %505 = sbr.rel (%p503) target = $region44
      $region43: #{conv2d_block.2} parent=27 // pred_region
        _
      $region44: #{conv2d_block.2} parent=27 // pred_fallthru
        _
    $region28: #{conv2d_block.2} parent=5 // pred_fallthru
      _
    %p506 = scmp.le.s32.totalorder 2, %s11
    // Predicated region
    $region45: #{conv2d_block.2} parent=5 // pred_check
      %p507 = pneg %p506
    $region46: #{conv2d_block.2} parent=5 // pred_check_branch
      %509 = sbr.rel (%p507) target = $region48
    $region47: #{conv2d_block.2} parent=5 // pred_region
      %s510 = ssub.s32 %s11, 2
      // Predicated region
      $region49: #{conv2d_block.2} parent=47 // pred_check
        %p511 = pneg %p103
      $region50: #{conv2d_block.2} parent=47 // pred_check_branch
        %513 = sbr.rel (%p511) target = $region52
      $region51: #{conv2d_block.2} parent=47 // pred_region
        %s514 = smul.u32 8, %s23
        %p515 = scmp.lt.s32.totalorder %s22, 1
        %s516 = scalar_select %p515, %s22, 1
        %p517 = scmp.lt.s32.totalorder %s514, 7
        %s518 = scalar_select %p517, %s514, 7
        %s519 = smul.addr %s516, 8
        %s520 = sadd.s32 %s518, %s519
        %s521 = smul.addr %s520, 4
        %s522 = scalar_lea.vmem %s2, %s521
      $region52: #{conv2d_block.2} parent=47 // pred_fallthru
        _
      // Predicated region
      $region53: #{conv2d_block.2} parent=47 // pred_check
        %p523 = pneg %p129
      $region54: #{conv2d_block.2} parent=47 // pred_check_branch
        %525 = sbr.rel (%p523) target = $region56
      $region55: #{conv2d_block.2} parent=47 // pred_region
        %p526 = scmp.lt.s32.totalorder %s22, 1
        %s527 = scalar_select %p526, %s22, 1
        %s528 = scalar_lea.vmem %s3, %s527
      $region56: #{conv2d_block.2} parent=47 // pred_fallthru
        _
      // Predicated region
      $region57: #{conv2d_block.2} parent=47 // pred_check
        %p529 = pneg %p155
      $region58: #{conv2d_block.2} parent=47 // pred_check_branch
        %531 = sbr.rel (%p529) target = $region60
      $region59: #{conv2d_block.2} parent=47 // pred_region
        %p532 = scmp.lt.s32.totalorder %s22, 1
        %s533 = scalar_select %p532, %s22, 1
        %s534 = scalar_lea.vmem %s4, %s533
      $region60: #{conv2d_block.2} parent=47 // pred_fallthru
        _
    $region48: #{conv2d_block.2} parent=5 // pred_fallthru
      _
  $region6: #{conv2d_block.2} parent=0 // loop_footer
    %s15 = sadd.s32 1, %s11
  $region7: #{conv2d_block.2} parent=0 // loop_footer_branch
    %10 = sbr.rel target = $region3
  $region8: #{conv2d_block.2} parent=0 // loop_exit
    _

</llo_original>
